<compile_context>
chip_gen: v7x
topology: tpu7x:2x2x1
jax: 0.10.0
libtpu: 0.0.40
codegen_flags: <defaults>
</compile_context>

<pallas_src>
import jax
import jax.numpy as jnp
from jax.experimental import pallas as pl
from jax.experimental.pallas import tpu as pltpu


def _round_up(n, m):
    return ((n + m - 1) // m) * m


# ----------------------------------------------------------------------------
# Pallas kernel: fused separable bilinear resample over ALL channels.
#   stage 1:  tmp = Wy_tile @ X_slab          (Tr,H) x (H,Kp)   bf16 MXU, f32 acc
#   stage 2:  out = tmp @ WxT_blockdiag       (Tr,Kp) x (Kp,Np) f32 MXU
# Kp and Np are multiples of 128, so the single output store is an unmasked
# lane-dense vst and no sub-vreg slicing is needed anywhere.
# ----------------------------------------------------------------------------
def _grid_sample_kernel(x_ref, wy_ref, wxt_ref, o_ref):
    tmp = jnp.dot(wy_ref[...], x_ref[...],
                  preferred_element_type=jnp.float32)          # (Tr, Kp) f32
    res = jnp.dot(tmp, wxt_ref[...],
                  preferred_element_type=jnp.float32)          # (Tr, Np) f32
    o_ref[...] = res.astype(o_ref.dtype)


def _row_tiling(T, H, Kp, Np, out_itemsize):
    """Pick output row tile Tr (multiple of 8), padded row count Tp, vmem limit."""
    budget = 24 * 1024 * 1024                 # conservative; fits v5e/v6e/v7x
    # Grid-invariant residents (x slab bf16, block-diag Wx^T f32). Counted with
    # default double buffering (single-buffering via pipeline_mode skipped for
    # portability; the budget already accounts for both copies).
    resident = 2 * (H * Kp * 2) + 2 * (Kp * Np * 4)
    # Per-output-row bytes: Wy tile (bf16, x2 buf) + out tile (x2 buf) + f32 tmp.
    per_row = 2 * (H * 2) + 2 * (Np * out_itemsize) + Kp * 4
    avail = max(budget - resident, 8 * per_row)
    tr_max = max(8, (avail // per_row) // 8 * 8)
    tr_max = min(tr_max, 512)                 # fatter tiles stop paying off

    Tp8 = _round_up(T, 8)
    if Tp8 <= tr_max:
        if Tp8 >= 128:
            # >=2 "parallel" row tiles so both v7x TensorCores get work.
            Tr = _round_up(-(-Tp8 // 2), 8)
        else:
            Tr = Tp8
    else:
        Tr = tr_max
    Tp = _round_up(T, Tr)

    vmem_est = resident + Tr * per_row
    vmem_limit = int(min(max(vmem_est + (4 << 20), 32 << 20), 100 << 20))
    return Tr, Tp, vmem_limit


def _separable_grid_sample(x, wy, wx):
    """x: (C,H,W) float, wy: (T,H) f32, wx: (T,W) f32 -> (C,T,T) in x.dtype.

    Computes out[c] = Wy @ x[c] @ Wx^T with one fused Pallas kernel call.
    """
    C, H, W = x.shape
    T = wy.shape[0]
    out_dtype = x.dtype
    out_itemsize = jnp.dtype(out_dtype).itemsize

    Kp = _round_up(C * W, 128)                # lane dim of packed input slab
    Np = _round_up(C * T, 128)                # lane dim of packed output slab
    Tr, Tp, vmem_limit = _row_tiling(T, H, Kp, Np, out_itemsize)

    # (C,H,W) -> (H, C*W) channel-packed slab, bf16 (halves the HBM read),
    # zero-padded to a 128-multiple lane width.
    x_slab = jnp.transpose(x.astype(jnp.bfloat16), (1, 0, 2)).reshape(H, C * W)
    x_slab = jnp.pad(x_slab, ((0, 0), (0, Kp - C * W)))

    # Block-diagonal Wx^T (C*W, C*T) -> padded (Kp, Np), kept in f32 (stage 2 is
    # tiny, so no MXU-rate argument for bf16 and no extra rounding step).
    # TODO(synk): for large C*W (>~2K) switch to per-channel 128-aligned slices,
    # or build the 2-tap-sparse Wy/Wx in-kernel from scalar-prefetched shifts,
    # instead of streaming this dense block-diagonal matrix from HBM.
    wxt_bd = jnp.kron(jnp.eye(C, dtype=jnp.float32),
                      jnp.transpose(wx).astype(jnp.float32))    # (C*W, C*T)
    wxt_bd = jnp.pad(wxt_bd, ((0, Kp - C * W), (0, Np - C * T)))

    # Row interpolation matrix: bf16 feed for full-rate stage-1 MXU; zero rows
    # pad the row count up to a multiple of the row tile.
    wy_p = jnp.pad(wy.astype(jnp.bfloat16), ((0, Tp - T), (0, 0)))

    out_slab = pl.pallas_call(
        _grid_sample_kernel,
        out_shape=jax.ShapeDtypeStruct((Tp, Np), out_dtype),
        grid=(Tp // Tr,),
        in_specs=[
            pl.BlockSpec((H, Kp), lambda i: (0, 0)),    # x slab (grid-invariant)
            pl.BlockSpec((Tr, H), lambda i: (i, 0)),    # Wy row tile
            pl.BlockSpec((Kp, Np), lambda i: (0, 0)),   # block-diag Wx^T (invariant)
        ],
        out_specs=pl.BlockSpec((Tr, Np), lambda i: (i, 0)),  # lane-dense output slab
        compiler_params=pltpu.CompilerParams(
            dimension_semantics=("parallel",),          # row tiles across TCs (v7x)
            vmem_limit_bytes=vmem_limit),
    )(x_slab, wy_p, wxt_bd)

    # Strip padding and restore (C, T, T); tiny relative to the kernel and fuses
    # into the surrounding jit.
    out = out_slab[:T, :C * T].reshape(T, C, T)
    return jnp.transpose(out, (1, 0, 2))


# ----------------------------------------------------------------------------
# 1-D bilinear interpolation matrix for one axis
# (F.grid_sample semantics: align_corners=True, padding_mode='zeros')
# ----------------------------------------------------------------------------
def _interp_matrix(coords, size):
    """coords: (T,) normalized coords in grid_sample convention -> (T, size) f32."""
    size_f = jnp.float32(size)
    pix = (coords + 1.0) * 0.5 * (size_f - 1.0)          # align_corners=True
    i0 = jnp.floor(pix)
    w1 = pix - i0
    w0 = 1.0 - w1
    i0i = i0.astype(jnp.int32)                           # integer tap indices
    i1i = i0i + 1
    idx = jnp.arange(size, dtype=jnp.int32)[None, :]     # (1, size)
    inb0 = (i0i >= 0) & (i0i <= size - 1)                # zeros padding: OOB tap -> 0
    inb1 = (i1i >= 0) & (i1i <= size - 1)
    m0 = (idx == i0i[:, None]) & inb0[:, None]
    m1 = (idx == i1i[:, None]) & inb1[:, None]
    return (jnp.where(m0, w0[:, None], 0.0) +
            jnp.where(m1, w1[:, None], 0.0)).astype(jnp.float32)


# ----------------------------------------------------------------------------
# JAX port of RandomTransform (forward semantics of the torch module)
# ----------------------------------------------------------------------------
class RandomTransform:
    def __init__(self, source_size, target_size, shift=8, fliplr=True,
                 flipud=False, mode='bilinear', align=True):
        assert mode == 'bilinear' and align, "only bilinear / align_corners=True"
        self.source_size = source_size
        self.target_size = target_size
        k = float(target_size) / float(source_size)
        # 1-D base of the separable grid: torch.linspace(-1, k, target_size)
        self.base = jnp.linspace(-1.0, k, target_size, dtype=jnp.float32)
        # torch.linspace(0, 1, source_size)[shift]
        self.delta = jnp.linspace(0.0, 1.0, source_size,
                                  dtype=jnp.float32)[shift]
        self.fliplr = fliplr
        self.flipud = flipud

    def _weights(self, r, H, W):
        """r: (4,) uniforms -> (Wy (T,H), Wx (T,W)) f32 interpolation matrices."""
        x_shift = (r[0] - 0.5) * 2.0 * self.delta
        y_shift = (r[1] - 0.5) * 2.0 * self.delta
        gx = self.base + x_shift                      # coord along output columns
        gy = self.base + y_shift                      # coord along output rows
        gx = jnp.where(jnp.logical_and(self.fliplr, r[2] > 0.5), -gx, gx)
        gy = jnp.where(jnp.logical_and(self.flipud, r[3] > 0.5), -gy, gy)
        return _interp_matrix(gy, H), _interp_matrix(gx, W)

    def __call__(self, x, randgen=None, key=None):
        """x: (C, H, W) -> (C, T, T); matches the torch forward (batch of 1)."""
        C, H, W = x.shape
        if randgen is None:
            randgen = jax.random.uniform(key, (1, 4), dtype=jnp.float32)
        r = randgen[0].astype(jnp.float32)
        wy, wx = self._weights(r, H, W)
        # TODO(synk): for data-augmentation loops, batch several images per
        # pallas_call by packing them along the lane dim next to channels.
        return _separable_grid_sample(x, wy, wx)

    def reference(self, x, randgen):
        """Pure-JAX f32 oracle (no Pallas): out[c] = Wy @ x[c] @ Wx^T."""
        r = randgen[0].astype(jnp.float32)
        wy, wx = self._weights(r, x.shape[1], x.shape[2])
        return jnp.einsum('th,chw,sw->cts', wy, x.astype(jnp.float32), wx)


if __name__ == "__main__":
    key = jax.random.PRNGKey(0)
    k_x, k_r = jax.random.split(key)

    C, S, T = 4, 16, 16                                # channels, source, target
    x = jax.random.normal(k_x, (C, S, S), dtype=jnp.float32)
    randgen = jax.random.uniform(k_r, (1, 4), dtype=jnp.float32)

    transform = RandomTransform(source_size=S, target_size=T, shift=8,
                                fliplr=True, flipud=False,
                                mode='bilinear', align=True)

    # One jit so pack/pad/unpack fuse around the single pallas_call dispatch.
    fwd = jax.jit(lambda xx, rr: transform(xx, randgen=rr))
    out = fwd(x, randgen)
    jax.block_until_ready(out)

    assert out.shape == (C, T, T), out.shape
    assert out.dtype == x.dtype, out.dtype

    # Correctness vs. the pure-JAX f32 reference (bf16 x / Wy feed => loose tol).
    ref = transform.reference(x, randgen)
    err = float(jnp.max(jnp.abs(out.astype(jnp.float32) - ref)))
    assert err < 1e-1, err
    print("KERNEL_OK")
</pallas_src>

<mosaic_0001>
module attributes {stable_mosaic.version = 11 : i64} {
  func.func @_grid_sample_kernel(%arg0: i32, %arg1: memref<16x128xbf16, #tpu.memory_space<vmem>>, %arg2: memref<16x16xbf16, #tpu.memory_space<vmem>>, %arg3: memref<128x128xf32, #tpu.memory_space<vmem>>, %arg4: memref<16x128xf32, #tpu.memory_space<vmem>>) attributes {dimension_semantics = [#tpu.dimension_semantics<parallel>], iteration_bounds = array<i64: 1>, scalar_prefetch = 0 : i64, scratch_operands = 0 : i64, tpu.core_type = #tpu.core_type<tc>, window_params = [{pipeline_mode = #tpu.pipeline_mode<synchronous>, transform_indices = @transform_0, window_bounds = array<i64: 16, 128>}, {transform_indices = @transform_1, window_bounds = array<i64: 16, 16>}, {pipeline_mode = #tpu.pipeline_mode<synchronous>, transform_indices = @transform_2, window_bounds = array<i64: 128, 128>}, {transform_indices = @transform_3, window_bounds = array<i64: 16, 128>}]} {
    %c0 = arith.constant 0 : index
    %c0_0 = arith.constant 0 : index
    %0 = vector.load %arg2[%c0, %c0_0] : memref<16x16xbf16, #tpu.memory_space<vmem>>, vector<16x16xbf16>
    %c0_1 = arith.constant 0 : index
    %c0_2 = arith.constant 0 : index
    %1 = vector.load %arg1[%c0_1, %c0_2] : memref<16x128xbf16, #tpu.memory_space<vmem>>, vector<16x128xbf16>
    %cst = arith.constant dense<0.000000e+00> : vector<16x128xf32>
    %2 = tpu.matmul %0, %1, %cst {dimension_numbers = #tpu.dot_dimension_numbers<[1], [0], [0], [1], [0, 0, 1, 1], [], []>} : vector<16x16xbf16>, vector<16x128xbf16>, vector<16x128xf32> -> vector<16x128xf32>
    %c0_3 = arith.constant 0 : index
    %c0_4 = arith.constant 0 : index
    %3 = vector.load %arg3[%c0_3, %c0_4] : memref<128x128xf32, #tpu.memory_space<vmem>>, vector<128x128xf32>
    %cst_5 = arith.constant dense<0.000000e+00> : vector<16x128xf32>
    %4 = tpu.matmul %2, %3, %cst_5 {dimension_numbers = #tpu.dot_dimension_numbers<[1], [0], [0], [1], [0, 0, 1, 1], [], []>} : vector<16x128xf32>, vector<128x128xf32>, vector<16x128xf32> -> vector<16x128xf32>
    %c0_6 = arith.constant 0 : index
    %c0_7 = arith.constant 0 : index
    %5 = vector.load %arg4[%c0_6, %c0_7] : memref<16x128xf32, #tpu.memory_space<vmem>>, vector<16x128xf32>
    tpu.vector_store %arg4[%c0_6, %c0_7], %4 {strides = array<i32>} : memref<16x128xf32, #tpu.memory_space<vmem>>, vector<16x128xf32>,
    return
  }
  func.func @transform_0(%arg0: i32) -> (i32, i32) {
    %c0_i32 = arith.constant 0 : i32
    %c0_i32_0 = arith.constant 0 : i32
    %c0_i32_1 = arith.constant 0 : i32
    return %c0_i32, %c0_i32_0 : i32, i32
  }
  func.func @transform_1(%arg0: i32) -> (i32, i32) {
    %c0_i32 = arith.constant 0 : i32
    %c0_i32_0 = arith.constant 0 : i32
    return %arg0, %c0_i32 : i32, i32
  }
  func.func @transform_2(%arg0: i32) -> (i32, i32) {
    %c0_i32 = arith.constant 0 : i32
    %c0_i32_0 = arith.constant 0 : i32
    %c0_i32_1 = arith.constant 0 : i32
    return %c0_i32, %c0_i32_0 : i32, i32
  }
  func.func @transform_3(%arg0: i32) -> (i32, i32) {
    %c0_i32 = arith.constant 0 : i32
    %c0_i32_0 = arith.constant 0 : i32
    return %arg0, %c0_i32 : i32, i32
  }
}

</mosaic_0001>

<llo_original>
// kernel: _lambda_.1
$region0: #{_lambda_.1}
  #allocation0 [shape = 'u32[]', space=smem, size = 0x4, offset = 0x4, fixed_abs, tag = 'smem constant byte address 0x4 - core index']
  #allocation1 [shape = 'u32[144,128]{1,0:T(1,128)}', space=vmem, size = 0x12000, scoped, tag = 'internal scratch']
  %s0 = inlined_call_operand.vmem [shape: bf16[16,128], index: 0, kind: input, shape index: {}]
  %s1 = inlined_call_operand.vmem [shape: bf16[16,16], index: 1, kind: input, shape index: {}]
  %s2 = inlined_call_operand.vmem [shape: f32[128,128], index: 2, kind: input, shape index: {}]
  %s3 = inlined_call_operand.vmem [shape: f32[16,128], index: 3, kind: output, shape index: {}]
  %s4 = sld [smem:[#allocation0]]
  $region22: #{_lambda_.1} parent=0
    _
  %s6 = ssub.s32 1, %s4
  %s7 = scalar_select 0, %s6, %s4
  // Predicated region
  $region2: #{_lambda_.1} parent=0 // pred_check
    _
  $region3: #{_lambda_.1} parent=0 // pred_check_branch
    %9 = sbr.rel (0) target = $region5
  $region4: #{_lambda_.1} parent=0 // pred_region
    _
  $region5: #{_lambda_.1} parent=0 // pred_fallthru
    _
  // Predicated region
  $region6: #{_lambda_.1} parent=0 // pred_check
    _
  $region7: #{_lambda_.1} parent=0 // pred_check_branch
    %11 = sbr.rel (0) target = $region9
  $region8: #{_lambda_.1} parent=0 // pred_region
    _
  $region9: #{_lambda_.1} parent=0 // pred_fallthru
    _
  // Predicated region
  $region10: #{_lambda_.1} parent=0 // pred_check
    _
  $region11: #{_lambda_.1} parent=0 // pred_check_branch
    %13 = sbr.rel (0) target = $region13
  $region12: #{_lambda_.1} parent=0 // pred_region
    _
  $region13: #{_lambda_.1} parent=0 // pred_fallthru
    _
  %v15 = vld [vmem:[%s1] sm:$0xf]
  %v16 = vld [vmem:[%s1 + $0x4] sm:$0xf]
  %v17 = vld [vmem:[%s0] sm:$0xf]
  %v18 = vld [vmem:[%s0 + $0x4] sm:$0xf]
  %v21 = vunpack.c.l.b16 %v15
  %v22 = vunpack.c.l.b16 %v16
  %v23 = vpack.c.b16 %v22, %v21
  %v26 = vunpack.c.l.b16 %v17
  %v27 = vunpack.c.l.b16 %v18
  %v28 = vpack.c.b16 %v27, %v26
  %vm30 = vcmask 130048
  %v32 = vsel %vm30, %v23, 0
  %34 = vmatprep.subr.bf16.mxu0 0
  %35 = vmatpush1.bf16.msra.mxu0 %v28
  %36 = vmatprep.subr.bf16.mxu0 0
  %37 = vmatpush1.bf16.msra.mxu0 0
  %38 = vmatprep.subr.bf16.mxu0 0
  %39 = vmatpush1.bf16.msra.mxu0 0
  %40 = vmatprep.subr.bf16.mxu0 0
  %41 = vmatpush1.bf16.msra.mxu0 0
  %42 = vmatprep.subr.bf16.mxu0 0
  %43 = vmatpush1.bf16.msra.mxu0 0
  %44 = vmatprep.subr.bf16.mxu0 0
  %45 = vmatpush1.bf16.msra.mxu0 0
  %46 = vmatprep.subr.bf16.mxu0 0
  %47 = vmatpush1.bf16.msra.mxu0 0
  %48 = vmatprep.subr.bf16.mxu0 0
  %49 = vmatpush1.bf16.msra.mxu0 0
  %50 = vmatprep.subr.bf16.mxu0 0
  %51 = vmatpush1.bf16.msra.mxu0 0
  %52 = vmatprep.subr.bf16.mxu0 0
  %53 = vmatpush1.bf16.msra.mxu0 0
  %54 = vmatprep.subr.bf16.mxu0 0
  %55 = vmatpush1.bf16.msra.mxu0 0
  %56 = vmatprep.subr.bf16.mxu0 0
  %57 = vmatpush1.bf16.msra.mxu0 0
  %58 = vmatprep.subr.bf16.mxu0 0
  %59 = vmatpush1.bf16.msra.mxu0 0
  %60 = vmatprep.subr.bf16.mxu0 0
  %61 = vmatpush1.bf16.msra.mxu0 0
  %62 = vmatprep.subr.bf16.mxu0 0
  %63 = vmatpush1.bf16.msra.mxu0 0
  %64 = vmatprep.subr.bf16.mxu0 0
  %65 = vmatpush1.bf16.msra.mxu0 0
  %66 = vmatprep.mubr.bf16.mxu0 0
  %67 = vmatmul.mubr.bf16.gmra.mrb[0].mxu0 %v32
  %v68 = vpop.f32.mrb[0].mxu0
  %v69 = vadd.f32 0.0, %v68
  %v70 = vpop.f32.mrb[0].mxu0
  %v71 = vpop.f32.mrb[0].mxu0
  %v72 = vadd.f32 0.0, %v71
  %v73 = vpop.f32.mrb[0].mxu0
  %74 = vdwg.mxu0
  %v75 = vld [vmem:[%s2] sm:$0xff]
  %v76 = vld [vmem:[%s2 + $0x8] sm:$0xff]
  %v77 = vld [vmem:[%s2 + $0x10] sm:$0xff]
  %v78 = vld [vmem:[%s2 + $0x18] sm:$0xff]
  %v79 = vld [vmem:[%s2 + $0x20] sm:$0xff]
  %v80 = vld [vmem:[%s2 + $0x28] sm:$0xff]
  %v81 = vld [vmem:[%s2 + $0x30] sm:$0xff]
  %v82 = vld [vmem:[%s2 + $0x38] sm:$0xff]
  %v83 = vld [vmem:[%s2 + $0x40] sm:$0xff]
  %v84 = vld [vmem:[%s2 + $0x48] sm:$0xff]
  %v85 = vld [vmem:[%s2 + $0x50] sm:$0xff]
  %v86 = vld [vmem:[%s2 + $0x58] sm:$0xff]
  %v87 = vld [vmem:[%s2 + $0x60] sm:$0xff]
  %v88 = vld [vmem:[%s2 + $0x68] sm:$0xff]
  %v89 = vld [vmem:[%s2 + $0x70] sm:$0xff]
  %v90 = vld [vmem:[%s2 + $0x78] sm:$0xff]
  %91 = vmatprep.subr.mxu0 0.0
  %92 = vmatpush1.msra.mxu0 %v75
  %93 = vmatprep.subr.mxu0 0.0
  %94 = vmatpush1.msra.mxu0 %v76
  %95 = vmatprep.subr.mxu0 0.0
  %96 = vmatpush1.msra.mxu0 %v77
  %97 = vmatprep.subr.mxu0 0.0
  %98 = vmatpush1.msra.mxu0 %v78
  %99 = vmatprep.subr.mxu0 0.0
  %100 = vmatpush1.msra.mxu0 %v79
  %101 = vmatprep.subr.mxu0 0.0
  %102 = vmatpush1.msra.mxu0 %v80
  %103 = vmatprep.subr.mxu0 0.0
  %104 = vmatpush1.msra.mxu0 %v81
  %105 = vmatprep.subr.mxu0 0.0
  %106 = vmatpush1.msra.mxu0 %v82
  %107 = vmatprep.subr.mxu0 0.0
  %108 = vmatpush1.msra.mxu0 %v83
  %109 = vmatprep.subr.mxu0 0.0
  %110 = vmatpush1.msra.mxu0 %v84
  %111 = vmatprep.subr.mxu0 0.0
  %112 = vmatpush1.msra.mxu0 %v85
  %113 = vmatprep.subr.mxu0 0.0
  %114 = vmatpush1.msra.mxu0 %v86
  %115 = vmatprep.subr.mxu0 0.0
  %116 = vmatpush1.msra.mxu0 %v87
  %117 = vmatprep.subr.mxu0 0.0
  %118 = vmatpush1.msra.mxu0 %v88
  %119 = vmatprep.subr.mxu0 0.0
  %120 = vmatpush1.msra.mxu0 %v89
  %121 = vmatprep.subr.mxu0 0.0
  %122 = vmatpush1.msra.mxu0 %v90
  %123 = vmatprep.subr.mxu0 0.0
  %124 = vmatpush1.msra.mxu0 0.0
  %125 = vmatprep.subr.mxu0 0.0
  %126 = vmatpush1.msra.mxu0 0.0
  %127 = vmatprep.subr.mxu0 0.0
  %128 = vmatpush1.msra.mxu0 0.0
  %129 = vmatprep.subr.mxu0 0.0
  %130 = vmatpush1.msra.mxu0 0.0
  %131 = vmatprep.subr.mxu0 0.0
  %132 = vmatpush1.msra.mxu0 0.0
  %133 = vmatprep.subr.mxu0 0.0
  %134 = vmatpush1.msra.mxu0 0.0
  %135 = vmatprep.subr.mxu0 0.0
  %136 = vmatpush1.msra.mxu0 0.0
  %137 = vmatprep.subr.mxu0 0.0
  %138 = vmatpush1.msra.mxu0 0.0
  %139 = vmatprep.subr.mxu0 0.0
  %140 = vmatpush1.msra.mxu0 0.0
  %141 = vmatprep.subr.mxu0 0.0
  %142 = vmatpush1.msra.mxu0 0.0
  %143 = vmatprep.subr.mxu0 0.0
  %144 = vmatpush1.msra.mxu0 0.0
  %145 = vmatprep.subr.mxu0 0.0
  %146 = vmatpush1.msra.mxu0 0.0
  %147 = vmatprep.subr.mxu0 0.0
  %148 = vmatpush1.msra.mxu0 0.0
  %149 = vmatprep.subr.mxu0 0.0
  %150 = vmatpush1.msra.mxu0 0.0
  %151 = vmatprep.subr.mxu0 0.0
  %152 = vmatpush1.msra.mxu0 0.0
  %153 = vmatprep.subr.mxu0 0.0
  %154 = vmatpush1.msra.mxu0 0.0
  %155 = vmatprep.mubr.f32.mxu0 0.0
  %156 = vmatmul.mubr.f32.gmra.mrb[0].mxu0 %v69
  %v157 = vpop.f32.mrb[0].mxu0
  %v158 = vadd.f32 0.0, %v157
  %v159 = vpop.f32.mrb[0].mxu0
  %160 = vmatprep.mubr.f32.mxu0 0.0
  %161 = vmatmul.mubr.f32.gmra.mrb[0].mxu0 %v72
  %v162 = vpop.f32.mrb[0].mxu0
  %v163 = vadd.f32 0.0, %v162
  %v164 = vpop.f32.mrb[0].mxu0
  %165 = vdwg.mxu0
  %166 = vst [vmem:[%s3] sm:$0xff] %v158
  %167 = vst [vmem:[%s3 + $0x8] sm:$0xff] %v163
  // Predicated region
  $region14: #{_lambda_.1} parent=0 // pred_check
    _
  $region15: #{_lambda_.1} parent=0 // pred_check_branch
    %169 = sbr.rel (0) target = $region17
  $region16: #{_lambda_.1} parent=0 // pred_region
    _
  $region17: #{_lambda_.1} parent=0 // pred_fallthru
    _
  // Predicated region
  $region18: #{_lambda_.1} parent=0 // pred_check
    _
  $region19: #{_lambda_.1} parent=0 // pred_check_branch
    %171 = sbr.rel (0) target = $region21
  $region20: #{_lambda_.1} parent=0 // pred_region
    _
  $region21: #{_lambda_.1} parent=0 // pred_fallthru
    _

</llo_original>
